<compile_context>
chip_gen: v7x
topology: tpu7x:2x2x1
jax: 0.10.0
libtpu: 0.0.40
codegen_flags: <defaults>
</compile_context>

<pallas_src>
import jax
import jax.numpy as jnp
from jax import lax
from jax.experimental import pallas as pl
from jax.experimental.pallas import tpu as pltpu


def conv_block_kernel(x_ref, w1_ref, s1_ref, b1_ref, w2_ref, s2_ref, b2_ref,
                      o_ref, xp_ref, hp_ref):
    """Fused (conv3x3 + BN + ReLU) x 2 for one batch element.

    x_ref  : (1, H, W*Cin)      input rows, width*channels flattened on lanes
    w1_ref : (3, W*Cin, W*C1)   bf16 banded weights, one slab per kernel row ky
    s1_ref : (1, W*C1)          folded BN1 scale, tiled across width
    b1_ref : (1, W*C1)          folded BN1 bias,  tiled across width
    w2_ref : (3, W*C1, W*C1)    bf16 banded weights for stage 2
    s2_ref : (1, W*C1)
    b2_ref : (1, W*C1)
    o_ref  : (1, H, W*C1)       lane-dense output (W*C1 == 128 here)
    xp_ref : VMEM (H+2, W*Cin) f32  stage-1 input with zero top/bottom halo rows
    hp_ref : VMEM (H+2, W*C1)  f32  stage-1 output with zero halo rows
    """
    H = o_ref.shape[1]

    # Height padding = zero halo rows in the scratch; width padding is already
    # folded into the banded weight matrices.  Re-zero every grid step so grid
    # steps stay independent (safe under megacore "parallel" sharding).
    xp_ref[...] = jnp.zeros_like(xp_ref)
    hp_ref[...] = jnp.zeros_like(hp_ref)
    xp_ref[1:H + 1, :] = x_ref[0]

    def stage(p_ref, w_ref, s_ref, b_ref):
        # One MXU matmul per kernel row ky: rows [ky, ky+H) of the padded slab
        # contracted against the (W*Cin_stage, W*Cout) banded weight slab.
        # bf16 operands, f32 accumulation; BN affine + ReLU epilogue in f32.
        acc = jnp.dot(p_ref[0:H, :].astype(jnp.bfloat16), w_ref[0],
                      preferred_element_type=jnp.float32)
        acc = acc + jnp.dot(p_ref[1:H + 1, :].astype(jnp.bfloat16), w_ref[1],
                            preferred_element_type=jnp.float32)
        acc = acc + jnp.dot(p_ref[2:H + 2, :].astype(jnp.bfloat16), w_ref[2],
                            preferred_element_type=jnp.float32)
        return jnp.maximum(acc * s_ref[...] + b_ref[...], 0.0)

    hp_ref[1:H + 1, :] = stage(xp_ref, w1_ref, s1_ref, b1_ref)               # stage 1
    o_ref[0] = stage(hp_ref, w2_ref, s2_ref, b2_ref).astype(o_ref.dtype)     # stage 2


def build_banded_weights(w_hwio, W):
    """(3, 3, Cin, Cout) -> (3, W*Cin, W*Cout) block-banded matrices.

    wb[ky, wi*Cin+ci, wo*Cout+co] = w[ky, wi-wo+1, ci, co] if 0 <= wi-wo+1 < 3
    else 0.  This folds the three kx taps AND the width zero-padding into one
    matmul contraction per kernel row, with a lane-dense (W*Cout) output.
    """
    KH, KW, Cin, Cout = w_hwio.shape
    kx = jnp.arange(KW)[:, None, None]
    wi = jnp.arange(W)[None, :, None]
    wo = jnp.arange(W)[None, None, :]
    sel = (wi == wo + kx - 1).astype(w_hwio.dtype)           # (KW, W, W)
    t = jnp.einsum("xiw,yxco->yicwo", sel, w_hwio)           # (KH, W, Cin, W, Cout)
    return t.reshape(KH, W * Cin, W * Cout)


def conv_block_fused(x_nhwc, w1, w2, s1, b1, s2, b2):
    """x_nhwc: (N,H,W,Cin) f32; w1/w2: (3,3,Ci,Co) HWIO; s*/b*: folded BN (Co,)."""
    N, H, W, Cin = x_nhwc.shape
    C1 = w1.shape[-1]
    KI, KO = W * Cin, W * C1

    x2d = x_nhwc.reshape(N, H, KI)                             # free HBM-layout reshape
    wb1 = build_banded_weights(w1, W).astype(jnp.bfloat16)     # (3, KI, KO)
    wb2 = build_banded_weights(w2, W).astype(jnp.bfloat16)     # (3, KO, KO)
    s1t = jnp.tile(s1.astype(jnp.float32), W).reshape(1, KO)
    b1t = jnp.tile(b1.astype(jnp.float32), W).reshape(1, KO)
    s2t = jnp.tile(s2.astype(jnp.float32), W).reshape(1, KO)
    b2t = jnp.tile(b2.astype(jnp.float32), W).reshape(1, KO)

    out = pl.pallas_call(
        conv_block_kernel,
        out_shape=jax.ShapeDtypeStruct((N, H, KO), jnp.float32),
        grid=(N,),
        in_specs=[
            pl.BlockSpec((1, H, KI), lambda n: (n, 0, 0)),
            pl.BlockSpec((3, KI, KO), lambda n: (0, 0, 0)),
            pl.BlockSpec((1, KO), lambda n: (0, 0)),
            pl.BlockSpec((1, KO), lambda n: (0, 0)),
            pl.BlockSpec((3, KO, KO), lambda n: (0, 0, 0)),
            pl.BlockSpec((1, KO), lambda n: (0, 0)),
            pl.BlockSpec((1, KO), lambda n: (0, 0)),
        ],
        out_specs=pl.BlockSpec((1, H, KO), lambda n: (n, 0, 0)),
        scratch_shapes=[
            pltpu.VMEM((H + 2, KI), jnp.float32),   # stage-1 input + halo rows
            pltpu.VMEM((H + 2, KO), jnp.float32),   # stage-1 output + halo rows
        ],
        compiler_params=pltpu.CompilerParams(
            dimension_semantics=("parallel",)),
    )(x2d, wb1, s1t, b1t, wb2, s2t, b2t)
    return out.reshape(N, H, W, C1)


def fold_bn(gamma, beta, mean, var, conv_bias, eps=1e-5):
    scale = gamma / jnp.sqrt(var + eps)
    bias = beta + scale * (conv_bias - mean)
    return scale, bias


def init_params(key, in_channels, out_channels):
    ks = jax.random.split(key, 4)
    c1 = out_channels
    return {
        # conv weights in HWIO layout: (3, 3, Cin, Cout)
        "w1": 0.1 * jax.random.normal(ks[0], (3, 3, in_channels, c1), jnp.float32),
        "b1": 0.05 * jax.random.normal(ks[1], (c1,), jnp.float32),
        "w2": 0.1 * jax.random.normal(ks[2], (3, 3, c1, c1), jnp.float32),
        "b2": 0.05 * jax.random.normal(ks[3], (c1,), jnp.float32),
        # BatchNorm (inference / running stats), deterministic non-trivial values
        "bn1_gamma": 1.0 + 0.1 * jnp.arange(c1, dtype=jnp.float32),
        "bn1_beta": 0.05 * jnp.arange(c1, dtype=jnp.float32),
        "bn1_mean": 0.02 * jnp.arange(c1, dtype=jnp.float32),
        "bn1_var": 0.5 + 0.1 * jnp.arange(c1, dtype=jnp.float32),
        "bn2_gamma": 1.0 - 0.05 * jnp.arange(c1, dtype=jnp.float32),
        "bn2_beta": -0.03 * jnp.arange(c1, dtype=jnp.float32),
        "bn2_mean": 0.01 * jnp.arange(c1, dtype=jnp.float32),
        "bn2_var": 0.8 + 0.05 * jnp.arange(c1, dtype=jnp.float32),
    }


def conv_block_pallas(x_nchw, p):
    # NCHW (PyTorch) -> NHWC (channels on lanes)
    x = jnp.transpose(x_nchw, (0, 2, 3, 1)).astype(jnp.float32)
    s1, b1 = fold_bn(p["bn1_gamma"], p["bn1_beta"], p["bn1_mean"], p["bn1_var"], p["b1"])
    s2, b2 = fold_bn(p["bn2_gamma"], p["bn2_beta"], p["bn2_mean"], p["bn2_var"], p["b2"])
    y = conv_block_fused(x, p["w1"], p["w2"], s1, b1, s2, b2)
    # back to NCHW to match the PyTorch output convention
    return jnp.transpose(y, (0, 3, 1, 2))


def conv_block_ref(x_nchw, p, eps=1e-5):
    """Pure-JAX reference (same eval-mode BN semantics).  Conv operands are
    cast to bf16 with f32 accumulation to mirror the kernel's MXU path."""
    x = jnp.transpose(x_nchw, (0, 2, 3, 1)).astype(jnp.float32)

    def stage(x, w, b, gamma, beta, mean, var):
        y = lax.conv_general_dilated(
            x.astype(jnp.bfloat16), w.astype(jnp.bfloat16),
            window_strides=(1, 1), padding=((1, 1), (1, 1)),
            dimension_numbers=("NHWC", "HWIO", "NHWC"),
            preferred_element_type=jnp.float32) + b
        y = (y - mean) / jnp.sqrt(var + eps) * gamma + beta
        return jnp.maximum(y, 0.0)

    h = stage(x, p["w1"], p["b1"], p["bn1_gamma"], p["bn1_beta"], p["bn1_mean"], p["bn1_var"])
    y = stage(h, p["w2"], p["b2"], p["bn2_gamma"], p["bn2_beta"], p["bn2_mean"], p["bn2_var"])
    return jnp.transpose(y, (0, 3, 1, 2))


if __name__ == "__main__":
    key = jax.random.PRNGKey(0)
    k_x, k_p = jax.random.split(key)

    N, Cin, Cout, H, W = 2, 4, 8, 16, 16
    x = jax.random.normal(k_x, (N, Cin, H, W), jnp.float32)   # NCHW like PyTorch
    params = init_params(k_p, Cin, Cout)

    out = jax.block_until_ready(jax.jit(conv_block_pallas)(x, params))
    ref = jax.block_until_ready(conv_block_ref(x, params))

    assert out.shape == (N, Cout, H, W), out.shape
    # bf16 matmul operands -> tolerance relaxed vs the old pure-f32 check.
    assert jnp.allclose(out, ref, atol=2e-2, rtol=2e-2), \
        float(jnp.max(jnp.abs(out - ref)))

    print("KERNEL_OK")
</pallas_src>

<mosaic_0001>
module attributes {stable_mosaic.version = 11 : i64} {
  func.func @conv_block_kernel(%arg0: i32, %arg1: memref<1x16x64xf32, #tpu.memory_space<vmem>>, %arg2: memref<3x64x128xbf16, #tpu.memory_space<vmem>>, %arg3: memref<1x128xf32, #tpu.memory_space<vmem>>, %arg4: memref<1x128xf32, #tpu.memory_space<vmem>>, %arg5: memref<3x128x128xbf16, #tpu.memory_space<vmem>>, %arg6: memref<1x128xf32, #tpu.memory_space<vmem>>, %arg7: memref<1x128xf32, #tpu.memory_space<vmem>>, %arg8: memref<1x16x128xf32, #tpu.memory_space<vmem>>, %arg9: memref<18x64xf32, #tpu.memory_space<vmem>>, %arg10: memref<18x128xf32, #tpu.memory_space<vmem>>) attributes {dimension_semantics = [#tpu.dimension_semantics<parallel>], iteration_bounds = array<i64: 2>, scalar_prefetch = 0 : i64, scratch_operands = 2 : i64, tpu.core_type = #tpu.core_type<tc>, window_params = [{transform_indices = @transform_0, window_bounds = array<i64: 1, 16, 64>}, {pipeline_mode = #tpu.pipeline_mode<synchronous>, transform_indices = @transform_1, window_bounds = array<i64: 3, 64, 128>}, {pipeline_mode = #tpu.pipeline_mode<synchronous>, transform_indices = @transform_2, window_bounds = array<i64: 1, 128>}, {pipeline_mode = #tpu.pipeline_mode<synchronous>, transform_indices = @transform_3, window_bounds = array<i64: 1, 128>}, {pipeline_mode = #tpu.pipeline_mode<synchronous>, transform_indices = @transform_4, window_bounds = array<i64: 3, 128, 128>}, {pipeline_mode = #tpu.pipeline_mode<synchronous>, transform_indices = @transform_5, window_bounds = array<i64: 1, 128>}, {pipeline_mode = #tpu.pipeline_mode<synchronous>, transform_indices = @transform_6, window_bounds = array<i64: 1, 128>}, {transform_indices = @transform_7, window_bounds = array<i64: 1, 16, 128>}]} {
    %cst = arith.constant 0.000000e+00 : f32
    %0 = vector.broadcast %cst : f32 to vector<18x64xf32>
    %c0 = arith.constant 0 : index
    %c0_0 = arith.constant 0 : index
    %1 = vector.load %arg9[%c0, %c0_0] : memref<18x64xf32, #tpu.memory_space<vmem>>, vector<18x64xf32>
    tpu.vector_store %arg9[%c0, %c0_0], %0 {strides = array<i32>} : memref<18x64xf32, #tpu.memory_space<vmem>>, vector<18x64xf32>,
    %cst_1 = arith.constant 0.000000e+00 : f32
    %2 = vector.broadcast %cst_1 : f32 to vector<18x128xf32>
    %c0_2 = arith.constant 0 : index
    %c0_3 = arith.constant 0 : index
    %3 = vector.load %arg10[%c0_2, %c0_3] : memref<18x128xf32, #tpu.memory_space<vmem>>, vector<18x128xf32>
    tpu.vector_store %arg10[%c0_2, %c0_3], %2 {strides = array<i32>} : memref<18x128xf32, #tpu.memory_space<vmem>>, vector<18x128xf32>,
    %c0_4 = arith.constant 0 : index
    %c0_5 = arith.constant 0 : index
    %c0_6 = arith.constant 0 : index
    %4 = vector.load %arg1[%c0_4, %c0_5, %c0_6] : memref<1x16x64xf32, #tpu.memory_space<vmem>>, vector<1x16x64xf32>
    %5 = vector.shape_cast %4 : vector<1x16x64xf32> to vector<16x64xf32>
    %c1 = arith.constant 1 : index
    %c0_7 = arith.constant 0 : index
    %6 = vector.load %arg9[%c1, %c0_7] : memref<18x64xf32, #tpu.memory_space<vmem>>, vector<16x64xf32>
    tpu.vector_store %arg9[%c1, %c0_7], %5 {strides = array<i32>} : memref<18x64xf32, #tpu.memory_space<vmem>>, vector<16x64xf32>,
    %c0_8 = arith.constant 0 : index
    %c0_9 = arith.constant 0 : index
    %7 = vector.load %arg9[%c0_8, %c0_9] : memref<18x64xf32, #tpu.memory_space<vmem>>, vector<16x64xf32>
    %8 = arith.truncf %7 : vector<16x64xf32> to vector<16x64xbf16>
    %c0_10 = arith.constant 0 : index
    %c0_11 = arith.constant 0 : index
    %c0_12 = arith.constant 0 : index
    %9 = vector.load %arg2[%c0_10, %c0_11, %c0_12] : memref<3x64x128xbf16, #tpu.memory_space<vmem>>, vector<1x64x128xbf16>
    %10 = vector.shape_cast %9 : vector<1x64x128xbf16> to vector<64x128xbf16>
    %cst_13 = arith.constant dense<0.000000e+00> : vector<16x128xf32>
    %11 = tpu.matmul %8, %10, %cst_13 {dimension_numbers = #tpu.dot_dimension_numbers<[1], [0], [0], [1], [0, 0, 1, 1], [], []>} : vector<16x64xbf16>, vector<64x128xbf16>, vector<16x128xf32> -> vector<16x128xf32>
    %c1_14 = arith.constant 1 : index
    %c0_15 = arith.constant 0 : index
    %12 = vector.load %arg9[%c1_14, %c0_15] : memref<18x64xf32, #tpu.memory_space<vmem>>, vector<16x64xf32>
    %13 = arith.truncf %12 : vector<16x64xf32> to vector<16x64xbf16>
    %c1_16 = arith.constant 1 : index
    %c0_17 = arith.constant 0 : index
    %c0_18 = arith.constant 0 : index
    %14 = vector.load %arg2[%c1_16, %c0_17, %c0_18] : memref<3x64x128xbf16, #tpu.memory_space<vmem>>, vector<1x64x128xbf16>
    %15 = vector.shape_cast %14 : vector<1x64x128xbf16> to vector<64x128xbf16>
    %cst_19 = arith.constant dense<0.000000e+00> : vector<16x128xf32>
    %16 = tpu.matmul %13, %15, %cst_19 {dimension_numbers = #tpu.dot_dimension_numbers<[1], [0], [0], [1], [0, 0, 1, 1], [], []>} : vector<16x64xbf16>, vector<64x128xbf16>, vector<16x128xf32> -> vector<16x128xf32>
    %17 = arith.addf %11, %16 : vector<16x128xf32>
    %c2 = arith.constant 2 : index
    %c0_20 = arith.constant 0 : index
    %18 = vector.load %arg9[%c2, %c0_20] : memref<18x64xf32, #tpu.memory_space<vmem>>, vector<16x64xf32>
    %19 = arith.truncf %18 : vector<16x64xf32> to vector<16x64xbf16>
    %c2_21 = arith.constant 2 : index
    %c0_22 = arith.constant 0 : index
    %c0_23 = arith.constant 0 : index
    %20 = vector.load %arg2[%c2_21, %c0_22, %c0_23] : memref<3x64x128xbf16, #tpu.memory_space<vmem>>, vector<1x64x128xbf16>
    %21 = vector.shape_cast %20 : vector<1x64x128xbf16> to vector<64x128xbf16>
    %cst_24 = arith.constant dense<0.000000e+00> : vector<16x128xf32>
    %22 = tpu.matmul %19, %21, %cst_24 {dimension_numbers = #tpu.dot_dimension_numbers<[1], [0], [0], [1], [0, 0, 1, 1], [], []>} : vector<16x64xbf16>, vector<64x128xbf16>, vector<16x128xf32> -> vector<16x128xf32>
    %23 = arith.addf %17, %22 : vector<16x128xf32>
    %c0_25 = arith.constant 0 : index
    %c0_26 = arith.constant 0 : index
    %24 = vector.load %arg3[%c0_25, %c0_26] : memref<1x128xf32, #tpu.memory_space<vmem>>, vector<1x128xf32>
    %25 = vector.broadcast %24 : vector<1x128xf32> to vector<16x128xf32>
    %26 = arith.mulf %23, %25 : vector<16x128xf32>
    %c0_27 = arith.constant 0 : index
    %c0_28 = arith.constant 0 : index
    %27 = vector.load %arg4[%c0_27, %c0_28] : memref<1x128xf32, #tpu.memory_space<vmem>>, vector<1x128xf32>
    %28 = vector.broadcast %27 : vector<1x128xf32> to vector<16x128xf32>
    %29 = arith.addf %26, %28 : vector<16x128xf32>
    %cst_29 = arith.constant 0.000000e+00 : f32
    %30 = vector.broadcast %cst_29 : f32 to vector<16x128xf32>
    %31 = arith.maximumf %29, %30 : vector<16x128xf32>
    %c1_30 = arith.constant 1 : index
    %c0_31 = arith.constant 0 : index
    %32 = vector.load %arg10[%c1_30, %c0_31] : memref<18x128xf32, #tpu.memory_space<vmem>>, vector<16x128xf32>
    tpu.vector_store %arg10[%c1_30, %c0_31], %31 {strides = array<i32>} : memref<18x128xf32, #tpu.memory_space<vmem>>, vector<16x128xf32>,
    %c0_32 = arith.constant 0 : index
    %c0_33 = arith.constant 0 : index
    %33 = vector.load %arg10[%c0_32, %c0_33] : memref<18x128xf32, #tpu.memory_space<vmem>>, vector<16x128xf32>
    %34 = arith.truncf %33 : vector<16x128xf32> to vector<16x128xbf16>
    %c0_34 = arith.constant 0 : index
    %c0_35 = arith.constant 0 : index
    %c0_36 = arith.constant 0 : index
    %35 = vector.load %arg5[%c0_34, %c0_35, %c0_36] : memref<3x128x128xbf16, #tpu.memory_space<vmem>>, vector<1x128x128xbf16>
    %36 = vector.shape_cast %35 : vector<1x128x128xbf16> to vector<128x128xbf16>
    %cst_37 = arith.constant dense<0.000000e+00> : vector<16x128xf32>
    %37 = tpu.matmul %34, %36, %cst_37 {dimension_numbers = #tpu.dot_dimension_numbers<[1], [0], [0], [1], [0, 0, 1, 1], [], []>} : vector<16x128xbf16>, vector<128x128xbf16>, vector<16x128xf32> -> vector<16x128xf32>
    %c1_38 = arith.constant 1 : index
    %c0_39 = arith.constant 0 : index
    %38 = vector.load %arg10[%c1_38, %c0_39] : memref<18x128xf32, #tpu.memory_space<vmem>>, vector<16x128xf32>
    %39 = arith.truncf %38 : vector<16x128xf32> to vector<16x128xbf16>
    %c1_40 = arith.constant 1 : index
    %c0_41 = arith.constant 0 : index
    %c0_42 = arith.constant 0 : index
    %40 = vector.load %arg5[%c1_40, %c0_41, %c0_42] : memref<3x128x128xbf16, #tpu.memory_space<vmem>>, vector<1x128x128xbf16>
    %41 = vector.shape_cast %40 : vector<1x128x128xbf16> to vector<128x128xbf16>
    %cst_43 = arith.constant dense<0.000000e+00> : vector<16x128xf32>
    %42 = tpu.matmul %39, %41, %cst_43 {dimension_numbers = #tpu.dot_dimension_numbers<[1], [0], [0], [1], [0, 0, 1, 1], [], []>} : vector<16x128xbf16>, vector<128x128xbf16>, vector<16x128xf32> -> vector<16x128xf32>
    %43 = arith.addf %37, %42 : vector<16x128xf32>
    %c2_44 = arith.constant 2 : index
    %c0_45 = arith.constant 0 : index
    %44 = vector.load %arg10[%c2_44, %c0_45] : memref<18x128xf32, #tpu.memory_space<vmem>>, vector<16x128xf32>
    %45 = arith.truncf %44 : vector<16x128xf32> to vector<16x128xbf16>
    %c2_46 = arith.constant 2 : index
    %c0_47 = arith.constant 0 : index
    %c0_48 = arith.constant 0 : index
    %46 = vector.load %arg5[%c2_46, %c0_47, %c0_48] : memref<3x128x128xbf16, #tpu.memory_space<vmem>>, vector<1x128x128xbf16>
    %47 = vector.shape_cast %46 : vector<1x128x128xbf16> to vector<128x128xbf16>
    %cst_49 = arith.constant dense<0.000000e+00> : vector<16x128xf32>
    %48 = tpu.matmul %45, %47, %cst_49 {dimension_numbers = #tpu.dot_dimension_numbers<[1], [0], [0], [1], [0, 0, 1, 1], [], []>} : vector<16x128xbf16>, vector<128x128xbf16>, vector<16x128xf32> -> vector<16x128xf32>
    %49 = arith.addf %43, %48 : vector<16x128xf32>
    %c0_50 = arith.constant 0 : index
    %c0_51 = arith.constant 0 : index
    %50 = vector.load %arg6[%c0_50, %c0_51] : memref<1x128xf32, #tpu.memory_space<vmem>>, vector<1x128xf32>
    %51 = vector.broadcast %50 : vector<1x128xf32> to vector<16x128xf32>
    %52 = arith.mulf %49, %51 : vector<16x128xf32>
    %c0_52 = arith.constant 0 : index
    %c0_53 = arith.constant 0 : index
    %53 = vector.load %arg7[%c0_52, %c0_53] : memref<1x128xf32, #tpu.memory_space<vmem>>, vector<1x128xf32>
    %54 = vector.broadcast %53 : vector<1x128xf32> to vector<16x128xf32>
    %55 = arith.addf %52, %54 : vector<16x128xf32>
    %cst_54 = arith.constant 0.000000e+00 : f32
    %56 = vector.broadcast %cst_54 : f32 to vector<16x128xf32>
    %57 = arith.maximumf %55, %56 : vector<16x128xf32>
    %c0_55 = arith.constant 0 : index
    %c0_56 = arith.constant 0 : index
    %c0_57 = arith.constant 0 : index
    %58 = vector.load %arg8[%c0_55, %c0_56, %c0_57] : memref<1x16x128xf32, #tpu.memory_space<vmem>>, vector<1x16x128xf32>
    %59 = vector.shape_cast %58 : vector<1x16x128xf32> to vector<16x128xf32>
    %60 = vector.shape_cast %57 : vector<16x128xf32> to vector<1x16x128xf32>
    tpu.vector_store %arg8[%c0_55, %c0_56, %c0_57], %60 {strides = array<i32>} : memref<1x16x128xf32, #tpu.memory_space<vmem>>, vector<1x16x128xf32>,
    return
  }
  func.func @transform_0(%arg0: i32) -> (i32, i32, i32) {
    %c0_i32 = arith.constant 0 : i32
    %c0_i32_0 = arith.constant 0 : i32
    %c0_i32_1 = arith.constant 0 : i32
    return %arg0, %c0_i32, %c0_i32_0 : i32, i32, i32
  }
  func.func @transform_1(%arg0: i32) -> (i32, i32, i32) {
    %c0_i32 = arith.constant 0 : i32
    %c0_i32_0 = arith.constant 0 : i32
    %c0_i32_1 = arith.constant 0 : i32
    %c0_i32_2 = arith.constant 0 : i32
    return %c0_i32, %c0_i32_0, %c0_i32_1 : i32, i32, i32
  }
  func.func @transform_2(%arg0: i32) -> (i32, i32) {
    %c0_i32 = arith.constant 0 : i32
    %c0_i32_0 = arith.constant 0 : i32
    %c0_i32_1 = arith.constant 0 : i32
    return %c0_i32, %c0_i32_0 : i32, i32
  }
  func.func @transform_3(%arg0: i32) -> (i32, i32) {
    %c0_i32 = arith.constant 0 : i32
    %c0_i32_0 = arith.constant 0 : i32
    %c0_i32_1 = arith.constant 0 : i32
    return %c0_i32, %c0_i32_0 : i32, i32
  }
  func.func @transform_4(%arg0: i32) -> (i32, i32, i32) {
    %c0_i32 = arith.constant 0 : i32
    %c0_i32_0 = arith.constant 0 : i32
    %c0_i32_1 = arith.constant 0 : i32
    %c0_i32_2 = arith.constant 0 : i32
    return %c0_i32, %c0_i32_0, %c0_i32_1 : i32, i32, i32
  }
  func.func @transform_5(%arg0: i32) -> (i32, i32) {
    %c0_i32 = arith.constant 0 : i32
    %c0_i32_0 = arith.constant 0 : i32
    %c0_i32_1 = arith.constant 0 : i32
    return %c0_i32, %c0_i32_0 : i32, i32
  }
  func.func @transform_6(%arg0: i32) -> (i32, i32) {
    %c0_i32 = arith.constant 0 : i32
    %c0_i32_0 = arith.constant 0 : i32
    %c0_i32_1 = arith.constant 0 : i32
    return %c0_i32, %c0_i32_0 : i32, i32
  }
  func.func @transform_7(%arg0: i32) -> (i32, i32, i32) {
    %c0_i32 = arith.constant 0 : i32
    %c0_i32_0 = arith.constant 0 : i32
    %c0_i32_1 = arith.constant 0 : i32
    return %arg0, %c0_i32, %c0_i32_0 : i32, i32, i32
  }
}

</mosaic_0001>

<llo_original>
// kernel: tile.23
$region0: #{tile.23}
  #allocation0 [shape = 's32[1]{0}', space=sflag, size = 0x4, scoped, tag = 'scoped memory for tile.23']
  %s0 = inlined_call_operand.vmem [shape: f32[8], index: 0, kind: input, shape index: {}]
  %s1 = inlined_call_operand.vmem [shape: f32[16,8], index: 1, kind: output, shape index: {}]
  // Predicated region
  $region2: #{tile.23} parent=0 // pred_check
    _
  $region3: #{tile.23} parent=0 // pred_check_branch
    %3 = sbr.rel (0) target = $region5
  $region4: #{tile.23} parent=0 // pred_region
    _
  $region5: #{tile.23} parent=0 // pred_fallthru
    _
  %v4 = vld [vmem:[%s0] ss:$0 sm:$0xff]
  %5 = vst [vmem:[%s1] sm:$0xff] %v4
  %s6 = scalar_lea.vmem %s1, 8
  %7 = vst [vmem:[%s6] sm:$0xff] %v4

// kernel: tile.24
$region0: #{tile.24}
  %s0 = inlined_call_operand.vmem [shape: f32[16,8], index: 0, kind: input, shape index: {}]
  %s1 = inlined_call_operand.vmem [shape: f32[1,128], index: 1, kind: output, shape index: {}]
  $region1: #{tile.24} parent=0
    #allocation0 [shape = 'u8[4096]{0}', space=vmem, size = 0x1000, scoped, tag = 'scoped mem for output reshape']
    %v2 = vld [vmem:[%s0] sm:$0x1]
    %vm3 = vcmask 64512
    %4 = vst.msk [vmem:[#allocation0] sm:$0x1] %vm3, %v2
    %s5 = scalar_lea.vmem %s0, 15
    %v6 = vld [vmem:[%s5] sm:$0x1]
    %7 = vrot.lane.b32.xlu0 %v6, 120
    %v8 = vpop.permute.xlu0 %7
    %vm9 = vcmask 1048512
    %10 = vst.msk [vmem:[#allocation0] sm:$0x1] %vm9, %v8
    %s11 = scalar_lea.vmem %s0, 14
    %v12 = vld [vmem:[%s11] sm:$0x1]
    %13 = vrot.lane.b32.xlu0 %v12, 112
    %v14 = vpop.permute.xlu0 %13
    %vm15 = vcmask 982912
    %16 = vst.msk [vmem:[#allocation0] sm:$0x1] %vm15, %v14
    %s17 = scalar_lea.vmem %s0, 13
    %v18 = vld [vmem:[%s17] sm:$0x1]
    %19 = vrot.lane.b32.xlu0 %v18, 104
    %v20 = vpop.permute.xlu0 %19
    %vm21 = vcmask 917312
    %22 = vst.msk [vmem:[#allocation0] sm:$0x1] %vm21, %v20
    %s23 = scalar_lea.vmem %s0, 12
    %v24 = vld [vmem:[%s23] sm:$0x1]
    %25 = vrot.lane.b32.xlu0 %v24, 96
    %v26 = vpop.permute.xlu0 %25
    %vm27 = vcmask 851712
    %28 = vst.msk [vmem:[#allocation0] sm:$0x1] %vm27, %v26
    %s29 = scalar_lea.vmem %s0, 11
    %v30 = vld [vmem:[%s29] sm:$0x1]
    %31 = vrot.lane.b32.xlu0 %v30, 88
    %v32 = vpop.permute.xlu0 %31
    %vm33 = vcmask 786112
    %34 = vst.msk [vmem:[#allocation0] sm:$0x1] %vm33, %v32
    %s35 = scalar_lea.vmem %s0, 10
    %v36 = vld [vmem:[%s35] sm:$0x1]
    %37 = vrot.lane.b32.xlu0 %v36, 80
    %v38 = vpop.permute.xlu0 %37
    %vm39 = vcmask 720512
    %40 = vst.msk [vmem:[#allocation0] sm:$0x1] %vm39, %v38
    %s41 = scalar_lea.vmem %s0, 9
    %v42 = vld [vmem:[%s41] sm:$0x1]
    %43 = vrot.lane.b32.xlu0 %v42, 72
    %v44 = vpop.permute.xlu0 %43
    %vm45 = vcmask 654912
    %46 = vst.msk [vmem:[#allocation0] sm:$0x1] %vm45, %v44
    %s47 = scalar_lea.vmem %s0, 8
    %v48 = vld [vmem:[%s47] sm:$0x1]
    %49 = vrot.lane.b32.xlu0 %v48, 64
    %v50 = vpop.permute.xlu0 %49
    %vm51 = vcmask 589312
    %52 = vst.msk [vmem:[#allocation0] sm:$0x1] %vm51, %v50
    %s53 = scalar_lea.vmem %s0, 7
    %v54 = vld [vmem:[%s53] sm:$0x1]
    %55 = vrot.lane.b32.xlu0 %v54, 56
    %v56 = vpop.permute.xlu0 %55
    %vm57 = vcmask 523712
    %58 = vst.msk [vmem:[#allocation0] sm:$0x1] %vm57, %v56
    %s59 = scalar_lea.vmem %s0, 6
    %v60 = vld [vmem:[%s59] sm:$0x1]
    %61 = vrot.lane.b32.xlu0 %v60, 48
    %v62 = vpop.permute.xlu0 %61
    %vm63 = vcmask 458112
    %64 = vst.msk [vmem:[#allocation0] sm:$0x1] %vm63, %v62
    %s65 = scalar_lea.vmem %s0, 5
    %v66 = vld [vmem:[%s65] sm:$0x1]
    %67 = vrot.lane.b32.xlu0 %v66, 40
    %v68 = vpop.permute.xlu0 %67
    %vm69 = vcmask 392512
    %70 = vst.msk [vmem:[#allocation0] sm:$0x1] %vm69, %v68
    %s71 = scalar_lea.vmem %s0, 4
    %v72 = vld [vmem:[%s71] sm:$0x1]
    %73 = vrot.lane.b32.xlu0 %v72, 32
    %v74 = vpop.permute.xlu0 %73
    %vm75 = vcmask 326912
    %76 = vst.msk [vmem:[#allocation0] sm:$0x1] %vm75, %v74
    %s77 = scalar_lea.vmem %s0, 3
    %v78 = vld [vmem:[%s77] sm:$0x1]
    %79 = vrot.lane.b32.xlu0 %v78, 24
    %v80 = vpop.permute.xlu0 %79
    %vm81 = vcmask 261312
    %82 = vst.msk [vmem:[#allocation0] sm:$0x1] %vm81, %v80
    %s83 = scalar_lea.vmem %s0, 2
    %v84 = vld [vmem:[%s83] sm:$0x1]
    %85 = vrot.lane.b32.xlu0 %v84, 16
    %v86 = vpop.permute.xlu0 %85
    %vm87 = vcmask 195712
    %88 = vst.msk [vmem:[#allocation0] sm:$0x1] %vm87, %v86
    %s89 = scalar_lea.vmem %s0, 1
    %v90 = vld [vmem:[%s89] sm:$0x1]
    %91 = vrot.lane.b32.xlu0 %v90, 8
    %v92 = vpop.permute.xlu0 %91
    %vm93 = vcmask 130112
    %94 = vst.msk [vmem:[#allocation0] sm:$0x1] %vm93, %v92
    %s96 = sshllo.u32 0, 1
    %v98 = vld [vmem:[#allocation0] sm:%s96]
    %s99 = sshllo.u32 0, 1
    %100 = vst [vmem:[%s1] sm:%s99] %v98

// kernel: conv_block_pallas.1
$region0: #{conv_block_pallas.1}
  #allocation0 [shape = 'u32[]', space=smem, size = 0x4, offset = 0x4, fixed_abs, tag = 'smem constant byte address 0x4 - core index']
  #allocation1 [shape = 'u32[144,128]{1,0:T(1,128)}', space=vmem, size = 0x12000, scoped, tag = 'internal scratch']
  #allocation2 [shape = 'f32[18,64]{1,0:T(8,128)}', space=vmem, size = 0x3000, scoped, tag = 'scratch operand']
  #allocation3 [shape = 'f32[18,128]{1,0:T(8,128)}', space=vmem, size = 0x3000, scoped, tag = 'scratch operand']
  %s0 = inlined_call_operand.vmem [shape: f32[2,16,64], index: 0, kind: input, shape index: {}]
  %s1 = inlined_call_operand.vmem [shape: bf16[3,64,128], index: 1, kind: input, shape index: {}]
  %s2 = inlined_call_operand.vmem [shape: f32[1,128], index: 2, kind: input, shape index: {}]
  %s3 = inlined_call_operand.vmem [shape: f32[1,128], index: 3, kind: input, shape index: {}]
  %s4 = inlined_call_operand.vmem [shape: bf16[3,128,128], index: 4, kind: input, shape index: {}]
  %s5 = inlined_call_operand.vmem [shape: f32[1,128], index: 5, kind: input, shape index: {}]
  %s6 = inlined_call_operand.vmem [shape: f32[1,128], index: 6, kind: input, shape index: {}]
  %s7 = inlined_call_operand.vmem [shape: f32[2,16,128], index: 7, kind: output, shape index: {}]
  %s8 = sld [smem:[#allocation0]]
  $region61: #{conv_block_pallas.1} parent=0
    _
  %s10 = ssub.s32 1, %s8
  %s11 = scalar_select 0, %s10, %s8
  loop: start=0, step=1, limit=4
  $region2: #{conv_block_pallas.1} parent=0 // loop_pre_header
    _
  $region3: #{conv_block_pallas.1} parent=0 // loop_header
    %s13 = sphi 0, %s17
    %p14 = scmp.ge.s32.totalorder %s13, 4
    %s23 = sphi 0, %s25
    %s26 = sphi 0, %s23
    %s27 = sphi 0, %s26
    %s43 = sphi 0, %s27
    %s47 = sphi 0, %s47
    %s49 = sphi 0, %s47
    %s50 = sphi 0, %s49
    %s64 = sphi 0, %s50
    %s68 = sphi 0, %s68
    %s70 = sphi 0, %s68
    %s71 = sphi 0, %s70
    %s85 = sphi 0, %s71
    %s89 = sphi 0, %s89
    %s91 = sphi 0, %s89
    %s92 = sphi 0, %s91
    %s106 = sphi 0, %s92
    %s110 = sphi 0, %s110
    %s112 = sphi 0, %s110
    %s113 = sphi 0, %s112
    %s127 = sphi 0, %s113
    %s131 = sphi 0, %s131
    %s133 = sphi 0, %s131
    %s134 = sphi 0, %s133
    %s148 = sphi 0, %s134
    %s152 = sphi 0, %s152
    %s154 = sphi 0, %s152
    %s155 = sphi 0, %s154
    %s169 = sphi 0, %s155
    %s175 = sphi 0, %s177
    %s178 = sphi 0, %s175
    %s179 = sphi 0, %s178
    %s195 = sphi 0, %s179
  $region4: #{conv_block_pallas.1} parent=0 // loop_header_branch
    %16 = sbr.rel (%p14) target = $region8
  $region5: #{conv_block_pallas.1} parent=0 // loop_body
    %s18 = ssub.s32 %s13, 1
    %s19 = ssub.s32 %s13, 2
    %s20 = sadd.s32 %s13, 1
    %s21 = ssub.s32 %s13, %s20
    %p22 = scmp.eq.s32.totalorder %s21, 0
    %s24 = sadd.s32 %s23, 1
    %s25 = scalar_select %p22, %s23, %s24
    %p28 = pneg %p22
    %p29 = scmp.eq.s32.totalorder %s13, 1
    %p30 = por %p28, %p29
    %p31 = scmp.ne.s32.totalorder %s23, %s26
    %p32 = scmp.eq.s32.totalorder %s13, 0
    %p33 = por %p31, %p32
    %p34 = scmp.ne.s32.totalorder %s23, %s26
    %p35 = scmp.eq.s32.totalorder %s18, 1
    %p36 = por %p34, %p35
    %p37 = scmp.ne.s32.totalorder %s26, %s27
    %p38 = scmp.eq.s32.totalorder %s18, 0
    %p39 = por %p37, %p38
    %p40 = scmp.ne.s32.totalorder %s26, %s27
    %p41 = scmp.eq.s32.totalorder %s19, 1
    %p42 = por %p40, %p41
    %p44 = scmp.ne.s32.totalorder %s27, %s43
    %p45 = scmp.eq.s32.totalorder %s19, 0
    %p46 = por %p44, %p45
    %s48 = sadd.s32 %s47, 1
    %p51 = scmp.eq.s32.totalorder %s13, 1
    %p52 = scmp.ne.s32.totalorder %s47, %s49
    %p53 = scmp.eq.s32.totalorder %s13, 0
    %p54 = por %p52, %p53
    %p55 = scmp.ne.s32.totalorder %s47, %s49
    %p56 = scmp.eq.s32.totalorder %s18, 1
    %p57 = por %p55, %p56
    %p58 = scmp.ne.s32.totalorder %s49, %s50
    %p59 = scmp.eq.s32.totalorder %s18, 0
    %p60 = por %p58, %p59
    %p61 = scmp.ne.s32.totalorder %s49, %s50
    %p62 = scmp.eq.s32.totalorder %s19, 1
    %p63 = por %p61, %p62
    %p65 = scmp.ne.s32.totalorder %s50, %s64
    %p66 = scmp.eq.s32.totalorder %s19, 0
    %p67 = por %p65, %p66
    %s69 = sadd.s32 %s68, 1
    %p72 = scmp.eq.s32.totalorder %s13, 1
    %p73 = scmp.ne.s32.totalorder %s68, %s70
    %p74 = scmp.eq.s32.totalorder %s13, 0
    %p75 = por %p73, %p74
    %p76 = scmp.ne.s32.totalorder %s68, %s70
    %p77 = scmp.eq.s32.totalorder %s18, 1
    %p78 = por %p76, %p77
    %p79 = scmp.ne.s32.totalorder %s70, %s71
    %p80 = scmp.eq.s32.totalorder %s18, 0
    %p81 = por %p79, %p80
    %p82 = scmp.ne.s32.totalorder %s70, %s71
    %p83 = scmp.eq.s32.totalorder %s19, 1
    %p84 = por %p82, %p83
    %p86 = scmp.ne.s32.totalorder %s71, %s85
    %p87 = scmp.eq.s32.totalorder %s19, 0
    %p88 = por %p86, %p87
    %s90 = sadd.s32 %s89, 1
    %p93 = scmp.eq.s32.totalorder %s13, 1
    %p94 = scmp.ne.s32.totalorder %s89, %s91
    %p95 = scmp.eq.s32.totalorder %s13, 0
    %p96 = por %p94, %p95
    %p97 = scmp.ne.s32.totalorder %s89, %s91
    %p98 = scmp.eq.s32.totalorder %s18, 1
    %p99 = por %p97, %p98
    %p100 = scmp.ne.s32.totalorder %s91, %s92
    %p101 = scmp.eq.s32.totalorder %s18, 0
    %p102 = por %p100, %p101
    %p103 = scmp.ne.s32.totalorder %s91, %s92
    %p104 = scmp.eq.s32.totalorder %s19, 1
    %p105 = por %p103, %p104
    %p107 = scmp.ne.s32.totalorder %s92, %s106
    %p108 = scmp.eq.s32.totalorder %s19, 0
    %p109 = por %p107, %p108
    %s111 = sadd.s32 %s110, 1
    %p114 = scmp.eq.s32.totalorder %s13, 1
    %p115 = scmp.ne.s32.totalorder %s110, %s112
    %p116 = scmp.eq.s32.totalorder %s13, 0
    %p117 = por %p115, %p116
    %p118 = scmp.ne.s32.totalorder %s110, %s112
    %p119 = scmp.eq.s32.totalorder %s18, 1
    %p120 = por %p118, %p119
    %p121 = scmp.ne.s32.totalorder %s112, %s113
    %p122 = scmp.eq.s32.totalorder %s18, 0
    %p123 = por %p121, %p122
    %p124 = scmp.ne.s32.totalorder %s112, %s113
    %p125 = scmp.eq.s32.totalorder %s19, 1
    %p126 = por %p124, %p125
    %p128 = scmp.ne.s32.totalorder %s113, %s127
    %p129 = scmp.eq.s32.totalorder %s19, 0
    %p130 = por %p128, %p129
    %s132 = sadd.s32 %s131, 1
    %p135 = scmp.eq.s32.totalorder %s13, 1
    %p136 = scmp.ne.s32.totalorder %s131, %s133
    %p137 = scmp.eq.s32.totalorder %s13, 0
    %p138 = por %p136, %p137
    %p139 = scmp.ne.s32.totalorder %s131, %s133
    %p140 = scmp.eq.s32.totalorder %s18, 1
    %p141 = por %p139, %p140
    %p142 = scmp.ne.s32.totalorder %s133, %s134
    %p143 = scmp.eq.s32.totalorder %s18, 0
    %p144 = por %p142, %p143
    %p145 = scmp.ne.s32.totalorder %s133, %s134
    %p146 = scmp.eq.s32.totalorder %s19, 1
    %p147 = por %p145, %p146
    %p149 = scmp.ne.s32.totalorder %s134, %s148
    %p150 = scmp.eq.s32.totalorder %s19, 0
    %p151 = por %p149, %p150
    %s153 = sadd.s32 %s152, 1
    %p156 = scmp.eq.s32.totalorder %s13, 1
    %p157 = scmp.ne.s32.totalorder %s152, %s154
    %p158 = scmp.eq.s32.totalorder %s13, 0
    %p159 = por %p157, %p158
    %p160 = scmp.ne.s32.totalorder %s152, %s154
    %p161 = scmp.eq.s32.totalorder %s18, 1
    %p162 = por %p160, %p161
    %p163 = scmp.ne.s32.totalorder %s154, %s155
    %p164 = scmp.eq.s32.totalorder %s18, 0
    %p165 = por %p163, %p164
    %p166 = scmp.ne.s32.totalorder %s154, %s155
    %p167 = scmp.eq.s32.totalorder %s19, 1
    %p168 = por %p166, %p167
    %p170 = scmp.ne.s32.totalorder %s155, %s169
    %p171 = scmp.eq.s32.totalorder %s19, 0
    %p172 = por %p170, %p171
    %s173 = ssub.s32 %s13, %s20
    %p174 = scmp.eq.s32.totalorder %s173, 0
    %s176 = sadd.s32 %s175, 1
    %s177 = scalar_select %p174, %s175, %s176
    %p180 = pneg %p174
    %p181 = scmp.eq.s32.totalorder %s13, 1
    %p182 = por %p180, %p181
    %p183 = scmp.ne.s32.totalorder %s175, %s178
    %p184 = scmp.eq.s32.totalorder %s13, 0
    %p185 = por %p183, %p184
    %p186 = scmp.ne.s32.totalorder %s175, %s178
    %p187 = scmp.eq.s32.totalorder %s18, 1
    %p188 = por %p186, %p187
    %p189 = scmp.ne.s32.totalorder %s178, %s179
    %p190 = scmp.eq.s32.totalorder %s18, 0
    %p191 = por %p189, %p190
    %p192 = scmp.ne.s32.totalorder %s178, %s179
    %p193 = scmp.eq.s32.totalorder %s19, 1
    %p194 = por %p192, %p193
    %p196 = scmp.ne.s32.totalorder %s179, %s195
    %p197 = scmp.eq.s32.totalorder %s19, 0
    %p198 = por %p196, %p197
    %p199 = scmp.le.s32.totalorder 1, %s13
    %p200 = scmp.lt.s32.totalorder %s13, 3
    %p201 = pnand %p199, %p200
    %p202 = pneg %p201
    // Predicated region
    $region9: #{conv_block_pallas.1} parent=5 // pred_check
      _
    $region10: #{conv_block_pallas.1} parent=5 // pred_check_branch
      %204 = sbr.rel (%p201) target = $region12
    $region11: #{conv_block_pallas.1} parent=5 // pred_region
      %s205 = ssub.s32 %s13, 1
      // Predicated region
      $region13: #{conv_block_pallas.1} parent=11 // pred_check
        %p206 = pneg %p60
      $region14: #{conv_block_pallas.1} parent=11 // pred_check_branch
        %208 = sbr.rel (%p206) target = $region16
      $region15: #{conv_block_pallas.1} parent=11 // pred_region
        _
      $region16: #{conv_block_pallas.1} parent=11 // pred_fallthru
        _
      // Predicated region
      $region17: #{conv_block_pallas.1} parent=11 // pred_check
        %p209 = pneg %p81
      $region18: #{conv_block_pallas.1} parent=11 // pred_check_branch
        %211 = sbr.rel (%p209) target = $region20
      $region19: #{conv_block_pallas.1} parent=11 // pred_region
        _
      $region20: #{conv_block_pallas.1} parent=11 // pred_fallthru
        _
      // Predicated region
      $region21: #{conv_block_pallas.1} parent=11 // pred_check
        %p212 = pneg %p102
      $region22: #{conv_block_pallas.1} parent=11 // pred_check_branch
        %214 = sbr.rel (%p212) target = $region24
      $region23: #{conv_block_pallas.1} parent=11 // pred_region
        _
      $region24: #{conv_block_pallas.1} parent=11 // pred_fallthru
        _
      // Predicated region
      $region25: #{conv_block_pallas.1} parent=11 // pred_check
        %p215 = pneg %p123
      $region26: #{conv_block_pallas.1} parent=11 // pred_check_branch
        %217 = sbr.rel (%p215) target = $region28
      $region27: #{conv_block_pallas.1} parent=11 // pred_region
        _
      $region28: #{conv_block_pallas.1} parent=11 // pred_fallthru
        _
      // Predicated region
      $region29: #{conv_block_pallas.1} parent=11 // pred_check
        %p218 = pneg %p144
      $region30: #{conv_block_pallas.1} parent=11 // pred_check_branch
        %220 = sbr.rel (%p218) target = $region32
      $region31: #{conv_block_pallas.1} parent=11 // pred_region
        _
      $region32: #{conv_block_pallas.1} parent=11 // pred_fallthru
        _
      // Predicated region
      $region33: #{conv_block_pallas.1} parent=11 // pred_check
        %p221 = pneg %p165
      $region34: #{conv_block_pallas.1} parent=11 // pred_check_branch
        %223 = sbr.rel (%p221) target = $region36
      $region35: #{conv_block_pallas.1} parent=11 // pred_region
        _
      $region36: #{conv_block_pallas.1} parent=11 // pred_fallthru
        _
    $region12: #{conv_block_pallas.1} parent=5 // pred_fallthru
      _
    %p224 = scmp.lt.s32.totalorder %s13, 2
    // Predicated region
    $region37: #{conv_block_pallas.1} parent=5 // pred_check
      %p225 = pneg %p224
    $region38: #{conv_block_pallas.1} parent=5 // pred_check_branch
      %227 = sbr.rel (%p225) target = $region40
    $region39: #{conv_block_pallas.1} parent=5 // pred_region
      // Predicated region
      $region41: #{conv_block_pallas.1} parent=39 // pred_check
        %p228 = pneg %p33
      $region42: #{conv_block_pallas.1} parent=39 // pred_check_branch
        %230 = sbr.rel (%p228) target = $region44
      $region43: #{conv_block_pallas.1} parent=39 // pred_region
        %p231 = scmp.lt.s32.totalorder %s13, 1
        %s232 = scalar_select %p231, %s13, 1
        %s233 = smul.addr %s232, 2
        %s234 = smul.addr %s233, 8
        %s235 = scalar_lea.vmem %s0, %s234
      $region44: #{conv_block_pallas.1} parent=39 // pred_fallthru
        _
    $region40: #{conv_block_pallas.1} parent=5 // pred_fallthru
      _
    %p236 = scmp.le.s32.totalorder 1, %s13
    %p237 = scmp.lt.s32.totalorder %s13, 3
    %p238 = pnand %p236, %p237
    %p239 = pneg %p238
    // Predicated region
    $region45: #{conv_block_pallas.1} parent=5 // pred_check
      _
    $region46: #{conv_block_pallas.1} parent=5 // pred_check_branch
      %241 = sbr.rel (%p238) target = $region48
    $region47: #{conv_block_pallas.1} parent=5 // pred_region
      %s242 = ssub.s32 %s13, 1
      %p243 = scmp.lt.s32.totalorder %s18, 1
      %s244 = scalar_select %p243, %s18, 1
      %s245 = smul.addr %s244, 2
      %s246 = smul.addr %s245, 8
      %s247 = scalar_lea.vmem %s0, %s246
      %p248 = pneg %p39
      %p249 = pneg %p36
      %p250 = pneg %p60
      %p251 = pneg %p57
      %p252 = pneg %p81
      %p253 = pneg %p78
      %p254 = pneg %p102
      %p255 = pneg %p99
      %p256 = pneg %p123
      %p257 = pneg %p120
      %p258 = pneg %p144
      %p259 = pneg %p141
      %p260 = pneg %p165
      %p261 = pneg %p162
      %p262 = pneg %p191
      %p263 = pneg %p188
      %p264 = scmp.lt.s32.totalorder %s18, 1
      %s265 = scalar_select %p264, %s18, 1
      %s266 = smul.addr %s265, 2
      %s267 = smul.addr %s266, 8
      %s268 = scalar_lea.vmem %s7, %s267
      %p269 = scmp.lt.s32.totalorder %s18, 1
      %s270 = scalar_select %p269, %s18, 1
      %s271 = smul.addr %s270, 2
      %s272 = smul.addr %s271, 8
      %s273 = scalar_lea.vmem %s0, %s272
      %p274 = scmp.lt.s32.totalorder %s18, 1
      %s275 = scalar_select %p274, %s18, 1
      %s276 = smul.addr %s275, 2
      %s277 = smul.addr %s276, 8
      %s278 = scalar_lea.vmem %s7, %s277
      %vm280 = vcmask 523264
      %281 = vst.msk [vmem:[#allocation2] sm:$0xff] %vm280, 0.0
      %282 = vst.msk [vmem:[#allocation2 + $0x8] sm:$0xff] %vm280, 0.0
      %vm283 = vcmask 517120
      %284 = vst.msk [vmem:[#allocation2 + $0x10] sm:$0x3] %vm283, 0.0
      %285 = vst [vmem:[#allocation3] sm:$0xff] 0.0
      %286 = vst [vmem:[#allocation3 + $0x8] sm:$0xff] 0.0
      %287 = vst [vmem:[#allocation3 + $0x10] sm:$0x3] 0.0
      %v288 = vld [vmem:[%s273] sm:$0xff]
      %v289 = vld [vmem:[%s273 + $0x8] sm:$0xff]
      %290 = vst.msk [vmem:[#allocation2 + $0x1] sm:$0xff] %vm280, %v288
      %291 = vst.msk [vmem:[#allocation2 + $0x9] sm:$0xff] %vm280, %v289
      %v292 = vld [vmem:[#allocation2] sm:$0xff]
      %v293 = vld [vmem:[#allocation2 + $0x8] sm:$0xff]
      %v294 = vpack.c.bf16 %v293, %v292
      %v295 = vld [vmem:[%s1] sm:$0xf]
      %v296 = vld [vmem:[%s1 + $0x4] sm:$0xf]
      %v297 = vld [vmem:[%s1 + $0x8] sm:$0xf]
      %v298 = vld [vmem:[%s1 + $0xc] sm:$0xf]
      %v299 = vld [vmem:[%s1 + $0x10] sm:$0xf]
      %v300 = vld [vmem:[%s1 + $0x14] sm:$0xf]
      %v301 = vld [vmem:[%s1 + $0x18] sm:$0xf]
      %v302 = vld [vmem:[%s1 + $0x1c] sm:$0xf]
      %v303 = vld [vmem:[#allocation2 + $0x1] sm:$0xff]
      %v304 = vld [vmem:[#allocation2 + $0x9] sm:$0xff]
      %v305 = vpack.c.bf16 %v304, %v303
      %s306 = scalar_lea.vmem %s1, 32
      %v307 = vld [vmem:[%s306] sm:$0xf]
      %v308 = vld [vmem:[%s306 + $0x4] sm:$0xf]
      %v309 = vld [vmem:[%s306 + $0x8] sm:$0xf]
      %v310 = vld [vmem:[%s306 + $0xc] sm:$0xf]
      %v311 = vld [vmem:[%s306 + $0x10] sm:$0xf]
      %v312 = vld [vmem:[%s306 + $0x14] sm:$0xf]
      %v313 = vld [vmem:[%s306 + $0x18] sm:$0xf]
      %v314 = vld [vmem:[%s306 + $0x1c] sm:$0xf]
      %v323 = vunpack.c.l.b16 %v307
      %v324 = vunpack.c.l.b16 %v308
      %v325 = vunpack.c.l.b16 %v309
      %v326 = vunpack.c.l.b16 %v310
      %v327 = vunpack.c.l.b16 %v311
      %v328 = vunpack.c.l.b16 %v312
      %v329 = vunpack.c.l.b16 %v313
      %v330 = vunpack.c.l.b16 %v314
      %v331 = vpack.c.b16 %v324, %v323
      %v332 = vpack.c.b16 %v326, %v325
      %v333 = vpack.c.b16 %v328, %v327
      %v334 = vpack.c.b16 %v330, %v329
      %v340 = vsel %vm280, %v305, 0
      %342 = vmatprep.subr.bf16.mxu0 0
      %343 = vmatpush1.bf16.msra.mxu0 %v331
      %344 = vmatprep.subr.bf16.mxu0 0
      %345 = vmatpush1.bf16.msra.mxu0 %v332
      %346 = vmatprep.subr.bf16.mxu0 0
      %347 = vmatpush1.bf16.msra.mxu0 %v333
      %348 = vmatprep.subr.bf16.mxu0 0
      %349 = vmatpush1.bf16.msra.mxu0 %v334
      %350 = vmatprep.subr.bf16.mxu0 0
      %351 = vmatpush1.bf16.msra.mxu0 0
      %352 = vmatprep.subr.bf16.mxu0 0
      %353 = vmatpush1.bf16.msra.mxu0 0
      %354 = vmatprep.subr.bf16.mxu0 0
      %355 = vmatpush1.bf16.msra.mxu0 0
      %356 = vmatprep.subr.bf16.mxu0 0
      %357 = vmatpush1.bf16.msra.mxu0 0
      %358 = vmatprep.subr.bf16.mxu0 0
      %359 = vmatpush1.bf16.msra.mxu0 0
      %360 = vmatprep.subr.bf16.mxu0 0
      %361 = vmatpush1.bf16.msra.mxu0 0
      %362 = vmatprep.subr.bf16.mxu0 0
      %363 = vmatpush1.bf16.msra.mxu0 0
      %364 = vmatprep.subr.bf16.mxu0 0
      %365 = vmatpush1.bf16.msra.mxu0 0
      %366 = vmatprep.subr.bf16.mxu0 0
      %367 = vmatpush1.bf16.msra.mxu0 0
      %368 = vmatprep.subr.bf16.mxu0 0
      %369 = vmatpush1.bf16.msra.mxu0 0
      %370 = vmatprep.subr.bf16.mxu0 0
      %371 = vmatpush1.bf16.msra.mxu0 0
      %372 = vmatprep.subr.bf16.mxu0 0
      %373 = vmatpush1.bf16.msra.mxu0 0
      %374 = vmatprep.mubr.bf16.mxu0 0
      %375 = vmatmul.mubr.bf16.gmra.mrb[0].mxu0 %v340
      %v376 = vpop.f32.mrb[0].mxu0
      %v377 = vadd.f32 0.0, %v376
      %v378 = vpop.f32.mrb[0].mxu0
      %v379 = vpop.f32.mrb[0].mxu0
      %v380 = vadd.f32 0.0, %v379
      %v381 = vpop.f32.mrb[0].mxu0
      %382 = vdwg.mxu0
      %v391 = vunpack.c.l.b16 %v295
      %v392 = vunpack.c.l.b16 %v296
      %v393 = vunpack.c.l.b16 %v297
      %v394 = vunpack.c.l.b16 %v298
      %v395 = vunpack.c.l.b16 %v299
      %v396 = vunpack.c.l.b16 %v300
      %v397 = vunpack.c.l.b16 %v301
      %v398 = vunpack.c.l.b16 %v302
      %v399 = vpack.c.b16 %v392, %v391
      %v400 = vpack.c.b16 %v394, %v393
      %v401 = vpack.c.b16 %v396, %v395
      %v402 = vpack.c.b16 %v398, %v397
      %v408 = vsel %vm280, %v294, 0
      %410 = vmatprep.subr.bf16.mxu0 0
      %411 = vmatpush1.bf16.msra.mxu0 %v399
      %412 = vmatprep.subr.bf16.mxu0 0
      %413 = vmatpush1.bf16.msra.mxu0 %v400
      %414 = vmatprep.subr.bf16.mxu0 0
      %415 = vmatpush1.bf16.msra.mxu0 %v401
      %416 = vmatprep.subr.bf16.mxu0 0
      %417 = vmatpush1.bf16.msra.mxu0 %v402
      %418 = vmatprep.subr.bf16.mxu0 0
      %419 = vmatpush1.bf16.msra.mxu0 0
      %420 = vmatprep.subr.bf16.mxu0 0
      %421 = vmatpush1.bf16.msra.mxu0 0
      %422 = vmatprep.subr.bf16.mxu0 0
      %423 = vmatpush1.bf16.msra.mxu0 0
      %424 = vmatprep.subr.bf16.mxu0 0
      %425 = vmatpush1.bf16.msra.mxu0 0
      %426 = vmatprep.subr.bf16.mxu0 0
      %427 = vmatpush1.bf16.msra.mxu0 0
      %428 = vmatprep.subr.bf16.mxu0 0
      %429 = vmatpush1.bf16.msra.mxu0 0
      %430 = vmatprep.subr.bf16.mxu0 0
      %431 = vmatpush1.bf16.msra.mxu0 0
      %432 = vmatprep.subr.bf16.mxu0 0
      %433 = vmatpush1.bf16.msra.mxu0 0
      %434 = vmatprep.subr.bf16.mxu0 0
      %435 = vmatpush1.bf16.msra.mxu0 0
      %436 = vmatprep.subr.bf16.mxu0 0
      %437 = vmatpush1.bf16.msra.mxu0 0
      %438 = vmatprep.subr.bf16.mxu0 0
      %439 = vmatpush1.bf16.msra.mxu0 0
      %440 = vmatprep.subr.bf16.mxu0 0
      %441 = vmatpush1.bf16.msra.mxu0 0
      %442 = vmatprep.mubr.bf16.mxu0 0
      %443 = vmatmul.mubr.bf16.gmra.mrb[0].mxu0 %v408
      %v444 = vpop.f32.mrb[0].mxu0
      %v445 = vadd.f32 %v377, %v444
      %v446 = vpop.f32.mrb[0].mxu0
      %v447 = vpop.f32.mrb[0].mxu0
      %v448 = vadd.f32 %v380, %v447
      %v449 = vpop.f32.mrb[0].mxu0
      %450 = vdwg.mxu0
      %v451 = vld [vmem:[#allocation2 + $0x2] sm:$0xff]
      %v452 = vld [vmem:[#allocation2 + $0xa] sm:$0xff]
      %v453 = vpack.c.bf16 %v452, %v451
      %s454 = scalar_lea.vmem %s1, 64
      %v455 = vld [vmem:[%s454] sm:$0xf]
      %v456 = vld [vmem:[%s454 + $0x4] sm:$0xf]
      %v457 = vld [vmem:[%s454 + $0x8] sm:$0xf]
      %v458 = vld [vmem:[%s454 + $0xc] sm:$0xf]
      %v459 = vld [vmem:[%s454 + $0x10] sm:$0xf]
      %v460 = vld [vmem:[%s454 + $0x14] sm:$0xf]
      %v461 = vld [vmem:[%s454 + $0x18] sm:$0xf]
      %v462 = vld [vmem:[%s454 + $0x1c] sm:$0xf]
      %v471 = vunpack.c.l.b16 %v455
      %v472 = vunpack.c.l.b16 %v456
      %v473 = vunpack.c.l.b16 %v457
      %v474 = vunpack.c.l.b16 %v458
      %v475 = vunpack.c.l.b16 %v459
      %v476 = vunpack.c.l.b16 %v460
      %v477 = vunpack.c.l.b16 %v461
      %v478 = vunpack.c.l.b16 %v462
      %v479 = vpack.c.b16 %v472, %v471
      %v480 = vpack.c.b16 %v474, %v473
      %v481 = vpack.c.b16 %v476, %v475
      %v482 = vpack.c.b16 %v478, %v477
      %v488 = vsel %vm280, %v453, 0
      %490 = vmatprep.subr.bf16.mxu0 0
      %491 = vmatpush1.bf16.msra.mxu0 %v479
      %492 = vmatprep.subr.bf16.mxu0 0
      %493 = vmatpush1.bf16.msra.mxu0 %v480
      %494 = vmatprep.subr.bf16.mxu0 0
      %495 = vmatpush1.bf16.msra.mxu0 %v481
      %496 = vmatprep.subr.bf16.mxu0 0
      %497 = vmatpush1.bf16.msra.mxu0 %v482
      %498 = vmatprep.subr.bf16.mxu0 0
      %499 = vmatpush1.bf16.msra.mxu0 0
      %500 = vmatprep.subr.bf16.mxu0 0
      %501 = vmatpush1.bf16.msra.mxu0 0
      %502 = vmatprep.subr.bf16.mxu0 0
      %503 = vmatpush1.bf16.msra.mxu0 0
      %504 = vmatprep.subr.bf16.mxu0 0
      %505 = vmatpush1.bf16.msra.mxu0 0
      %506 = vmatprep.subr.bf16.mxu0 0
      %507 = vmatpush1.bf16.msra.mxu0 0
      %508 = vmatprep.subr.bf16.mxu0 0
      %509 = vmatpush1.bf16.msra.mxu0 0
      %510 = vmatprep.subr.bf16.mxu0 0
      %511 = vmatpush1.bf16.msra.mxu0 0
      %512 = vmatprep.subr.bf16.mxu0 0
      %513 = vmatpush1.bf16.msra.mxu0 0
      %514 = vmatprep.subr.bf16.mxu0 0
      %515 = vmatpush1.bf16.msra.mxu0 0
      %516 = vmatprep.subr.bf16.mxu0 0
      %517 = vmatpush1.bf16.msra.mxu0 0
      %518 = vmatprep.subr.bf16.mxu0 0
      %519 = vmatpush1.bf16.msra.mxu0 0
      %520 = vmatprep.subr.bf16.mxu0 0
      %521 = vmatpush1.bf16.msra.mxu0 0
      %522 = vmatprep.mubr.bf16.mxu0 0
      %523 = vmatmul.mubr.bf16.gmra.mrb[0].mxu0 %v488
      %v524 = vpop.f32.mrb[0].mxu0
      %v525 = vadd.f32 0.0, %v524
      %v526 = vpop.f32.mrb[0].mxu0
      %v527 = vpop.f32.mrb[0].mxu0
      %v528 = vadd.f32 0.0, %v527
      %v529 = vpop.f32.mrb[0].mxu0
      %530 = vdwg.mxu0
      %v531 = vadd.f32 %v445, %v525
      %v532 = vadd.f32 %v448, %v528
      %v533 = vld [vmem:[%s2] sm:$0x1]
      %v535 = vlaneseq
      %v536 = vshrl.u32 %v535, 7
      %v537 = vsub.s32 0, %v536
      %v538 = vrot.slane %v533, %v537
      %v540 = vmul.f32 %v531, %v538
      %v541 = vmul.f32 %v532, %v538
      %v542 = vld [vmem:[%s3] sm:$0x1]
      %v544 = vlaneseq
      %v545 = vshrl.u32 %v544, 7
      %v546 = vsub.s32 0, %v545
      %v547 = vrot.slane %v542, %v546
      %v549 = vadd.f32 %v540, %v547
      %v550 = vadd.f32 %v541, %v547
      %v551 = vmax.f32 %v549, 0.0
      %v552 = vmax.f32 %v550, 0.0
      %553 = vst [vmem:[#allocation3 + $0x1] sm:$0xff] %v551
      %554 = vst [vmem:[#allocation3 + $0x9] sm:$0xff] %v552
      %v555 = vld [vmem:[#allocation3] sm:$0xff]
      %v556 = vld [vmem:[#allocation3 + $0x8] sm:$0xff]
      %v557 = vpack.c.bf16 %v556, %v555
      %v558 = vld [vmem:[%s4] sm:$0xf]
      %v559 = vld [vmem:[%s4 + $0x4] sm:$0xf]
      %v560 = vld [vmem:[%s4 + $0x8] sm:$0xf]
      %v561 = vld [vmem:[%s4 + $0xc] sm:$0xf]
      %v562 = vld [vmem:[%s4 + $0x10] sm:$0xf]
      %v563 = vld [vmem:[%s4 + $0x14] sm:$0xf]
      %v564 = vld [vmem:[%s4 + $0x18] sm:$0xf]
      %v565 = vld [vmem:[%s4 + $0x1c] sm:$0xf]
      %v566 = vld [vmem:[%s4 + $0x20] sm:$0xf]
      %v567 = vld [vmem:[%s4 + $0x24] sm:$0xf]
      %v568 = vld [vmem:[%s4 + $0x28] sm:$0xf]
      %v569 = vld [vmem:[%s4 + $0x2c] sm:$0xf]
      %v570 = vld [vmem:[%s4 + $0x30] sm:$0xf]
      %v571 = vld [vmem:[%s4 + $0x34] sm:$0xf]
      %v572 = vld [vmem:[%s4 + $0x38] sm:$0xf]
      %v573 = vld [vmem:[%s4 + $0x3c] sm:$0xf]
      %v574 = vld [vmem:[#allocation3 + $0x1] sm:$0xff]
      %v575 = vld [vmem:[#allocation3 + $0x9] sm:$0xff]
      %v576 = vpack.c.bf16 %v575, %v574
      %s577 = scalar_lea.vmem %s4, 64
      %v578 = vld [vmem:[%s577] sm:$0xf]
      %v579 = vld [vmem:[%s577 + $0x4] sm:$0xf]
      %v580 = vld [vmem:[%s577 + $0x8] sm:$0xf]
      %v581 = vld [vmem:[%s577 + $0xc] sm:$0xf]
      %v582 = vld [vmem:[%s577 + $0x10] sm:$0xf]
      %v583 = vld [vmem:[%s577 + $0x14] sm:$0xf]
      %v584 = vld [vmem:[%s577 + $0x18] sm:$0xf]
      %v585 = vld [vmem:[%s577 + $0x1c] sm:$0xf]
      %v586 = vld [vmem:[%s577 + $0x20] sm:$0xf]
      %v587 = vld [vmem:[%s577 + $0x24] sm:$0xf]
      %v588 = vld [vmem:[%s577 + $0x28] sm:$0xf]
      %v589 = vld [vmem:[%s577 + $0x2c] sm:$0xf]
      %v590 = vld [vmem:[%s577 + $0x30] sm:$0xf]
      %v591 = vld [vmem:[%s577 + $0x34] sm:$0xf]
      %v592 = vld [vmem:[%s577 + $0x38] sm:$0xf]
      %v593 = vld [vmem:[%s577 + $0x3c] sm:$0xf]
      %v610 = vunpack.c.l.b16 %v578
      %v611 = vunpack.c.l.b16 %v579
      %v612 = vunpack.c.l.b16 %v580
      %v613 = vunpack.c.l.b16 %v581
      %v614 = vunpack.c.l.b16 %v582
      %v615 = vunpack.c.l.b16 %v583
      %v616 = vunpack.c.l.b16 %v584
      %v617 = vunpack.c.l.b16 %v585
      %v618 = vunpack.c.l.b16 %v586
      %v619 = vunpack.c.l.b16 %v587
      %v620 = vunpack.c.l.b16 %v588
      %v621 = vunpack.c.l.b16 %v589
      %v622 = vunpack.c.l.b16 %v590
      %v623 = vunpack.c.l.b16 %v591
      %v624 = vunpack.c.l.b16 %v592
      %v625 = vunpack.c.l.b16 %v593
      %v626 = vpack.c.b16 %v611, %v610
      %v627 = vpack.c.b16 %v613, %v612
      %v628 = vpack.c.b16 %v615, %v614
      %v629 = vpack.c.b16 %v617, %v616
      %v630 = vpack.c.b16 %v619, %v618
      %v631 = vpack.c.b16 %v621, %v620
      %v632 = vpack.c.b16 %v623, %v622
      %v633 = vpack.c.b16 %v625, %v624
      %642 = vmatprep.subr.bf16.mxu0 0
      %643 = vmatpush1.bf16.msra.mxu0 %v626
      %644 = vmatprep.subr.bf16.mxu0 0
      %645 = vmatpush1.bf16.msra.mxu0 %v627
      %646 = vmatprep.subr.bf16.mxu0 0
      %647 = vmatpush1.bf16.msra.mxu0 %v628
      %648 = vmatprep.subr.bf16.mxu0 0
      %649 = vmatpush1.bf16.msra.mxu0 %v629
      %650 = vmatprep.subr.bf16.mxu0 0
      %651 = vmatpush1.bf16.msra.mxu0 %v630
      %652 = vmatprep.subr.bf16.mxu0 0
      %653 = vmatpush1.bf16.msra.mxu0 %v631
      %654 = vmatprep.subr.bf16.mxu0 0
      %655 = vmatpush1.bf16.msra.mxu0 %v632
      %656 = vmatprep.subr.bf16.mxu0 0
      %657 = vmatpush1.bf16.msra.mxu0 %v633
      %658 = vmatprep.subr.bf16.mxu0 0
      %659 = vmatpush1.bf16.msra.mxu0 0
      %660 = vmatprep.subr.bf16.mxu0 0
      %661 = vmatpush1.bf16.msra.mxu0 0
      %662 = vmatprep.subr.bf16.mxu0 0
      %663 = vmatpush1.bf16.msra.mxu0 0
      %664 = vmatprep.subr.bf16.mxu0 0
      %665 = vmatpush1.bf16.msra.mxu0 0
      %666 = vmatprep.subr.bf16.mxu0 0
      %667 = vmatpush1.bf16.msra.mxu0 0
      %668 = vmatprep.subr.bf16.mxu0 0
      %669 = vmatpush1.bf16.msra.mxu0 0
      %670 = vmatprep.subr.bf16.mxu0 0
      %671 = vmatpush1.bf16.msra.mxu0 0
      %672 = vmatprep.subr.bf16.mxu0 0
      %673 = vmatpush1.bf16.msra.mxu0 0
      %674 = vmatprep.mubr.bf16.mxu0 0
      %675 = vmatmul.mubr.bf16.gmra.mrb[0].mxu0 %v576
      %v676 = vpop.f32.mrb[0].mxu0
      %v677 = vadd.f32 0.0, %v676
      %v678 = vpop.f32.mrb[0].mxu0
      %v679 = vpop.f32.mrb[0].mxu0
      %v680 = vadd.f32 0.0, %v679
      %v681 = vpop.f32.mrb[0].mxu0
      %682 = vdwg.mxu0
      %v699 = vunpack.c.l.b16 %v558
      %v700 = vunpack.c.l.b16 %v559
      %v701 = vunpack.c.l.b16 %v560
      %v702 = vunpack.c.l.b16 %v561
      %v703 = vunpack.c.l.b16 %v562
      %v704 = vunpack.c.l.b16 %v563
      %v705 = vunpack.c.l.b16 %v564
      %v706 = vunpack.c.l.b16 %v565
      %v707 = vunpack.c.l.b16 %v566
      %v708 = vunpack.c.l.b16 %v567
      %v709 = vunpack.c.l.b16 %v568
      %v710 = vunpack.c.l.b16 %v569
      %v711 = vunpack.c.l.b16 %v570
      %v712 = vunpack.c.l.b16 %v571
      %v713 = vunpack.c.l.b16 %v572
      %v714 = vunpack.c.l.b16 %v573
      %v715 = vpack.c.b16 %v700, %v699
      %v716 = vpack.c.b16 %v702, %v701
      %v717 = vpack.c.b16 %v704, %v703
      %v718 = vpack.c.b16 %v706, %v705
      %v719 = vpack.c.b16 %v708, %v707
      %v720 = vpack.c.b16 %v710, %v709
      %v721 = vpack.c.b16 %v712, %v711
      %v722 = vpack.c.b16 %v714, %v713
      %731 = vmatprep.subr.bf16.mxu0 0
      %732 = vmatpush1.bf16.msra.mxu0 %v715
      %733 = vmatprep.subr.bf16.mxu0 0
      %734 = vmatpush1.bf16.msra.mxu0 %v716
      %735 = vmatprep.subr.bf16.mxu0 0
      %736 = vmatpush1.bf16.msra.mxu0 %v717
      %737 = vmatprep.subr.bf16.mxu0 0
      %738 = vmatpush1.bf16.msra.mxu0 %v718
      %739 = vmatprep.subr.bf16.mxu0 0
      %740 = vmatpush1.bf16.msra.mxu0 %v719
      %741 = vmatprep.subr.bf16.mxu0 0
      %742 = vmatpush1.bf16.msra.mxu0 %v720
      %743 = vmatprep.subr.bf16.mxu0 0
      %744 = vmatpush1.bf16.msra.mxu0 %v721
      %745 = vmatprep.subr.bf16.mxu0 0
      %746 = vmatpush1.bf16.msra.mxu0 %v722
      %747 = vmatprep.subr.bf16.mxu0 0
      %748 = vmatpush1.bf16.msra.mxu0 0
      %749 = vmatprep.subr.bf16.mxu0 0
      %750 = vmatpush1.bf16.msra.mxu0 0
      %751 = vmatprep.subr.bf16.mxu0 0
      %752 = vmatpush1.bf16.msra.mxu0 0
      %753 = vmatprep.subr.bf16.mxu0 0
      %754 = vmatpush1.bf16.msra.mxu0 0
      %755 = vmatprep.subr.bf16.mxu0 0
      %756 = vmatpush1.bf16.msra.mxu0 0
      %757 = vmatprep.subr.bf16.mxu0 0
      %758 = vmatpush1.bf16.msra.mxu0 0
      %759 = vmatprep.subr.bf16.mxu0 0
      %760 = vmatpush1.bf16.msra.mxu0 0
      %761 = vmatprep.subr.bf16.mxu0 0
      %762 = vmatpush1.bf16.msra.mxu0 0
      %763 = vmatprep.mubr.bf16.mxu0 0
      %764 = vmatmul.mubr.bf16.gmra.mrb[0].mxu0 %v557
      %v765 = vpop.f32.mrb[0].mxu0
      %v766 = vadd.f32 %v677, %v765
      %v767 = vpop.f32.mrb[0].mxu0
      %v768 = vpop.f32.mrb[0].mxu0
      %v769 = vadd.f32 %v680, %v768
      %v770 = vpop.f32.mrb[0].mxu0
      %771 = vdwg.mxu0
      %v772 = vld [vmem:[#allocation3 + $0x2] sm:$0xff]
      %v773 = vld [vmem:[#allocation3 + $0xa] sm:$0xff]
      %v774 = vpack.c.bf16 %v773, %v772
      %s775 = scalar_lea.vmem %s4, 128
      %v776 = vld [vmem:[%s775] sm:$0xf]
      %v777 = vld [vmem:[%s775 + $0x4] sm:$0xf]
      %v778 = vld [vmem:[%s775 + $0x8] sm:$0xf]
      %v779 = vld [vmem:[%s775 + $0xc] sm:$0xf]
      %v780 = vld [vmem:[%s775 + $0x10] sm:$0xf]
      %v781 = vld [vmem:[%s775 + $0x14] sm:$0xf]
      %v782 = vld [vmem:[%s775 + $0x18] sm:$0xf]
      %v783 = vld [vmem:[%s775 + $0x1c] sm:$0xf]
      %v784 = vld [vmem:[%s775 + $0x20] sm:$0xf]
      %v785 = vld [vmem:[%s775 + $0x24] sm:$0xf]
      %v786 = vld [vmem:[%s775 + $0x28] sm:$0xf]
      %v787 = vld [vmem:[%s775 + $0x2c] sm:$0xf]
      %v788 = vld [vmem:[%s775 + $0x30] sm:$0xf]
      %v789 = vld [vmem:[%s775 + $0x34] sm:$0xf]
      %v790 = vld [vmem:[%s775 + $0x38] sm:$0xf]
      %v791 = vld [vmem:[%s775 + $0x3c] sm:$0xf]
      %v808 = vunpack.c.l.b16 %v776
      %v809 = vunpack.c.l.b16 %v777
      %v810 = vunpack.c.l.b16 %v778
      %v811 = vunpack.c.l.b16 %v779
      %v812 = vunpack.c.l.b16 %v780
      %v813 = vunpack.c.l.b16 %v781
      %v814 = vunpack.c.l.b16 %v782
      %v815 = vunpack.c.l.b16 %v783
      %v816 = vunpack.c.l.b16 %v784
      %v817 = vunpack.c.l.b16 %v785
      %v818 = vunpack.c.l.b16 %v786
      %v819 = vunpack.c.l.b16 %v787
      %v820 = vunpack.c.l.b16 %v788
      %v821 = vunpack.c.l.b16 %v789
      %v822 = vunpack.c.l.b16 %v790
      %v823 = vunpack.c.l.b16 %v791
      %v824 = vpack.c.b16 %v809, %v808
      %v825 = vpack.c.b16 %v811, %v810
      %v826 = vpack.c.b16 %v813, %v812
      %v827 = vpack.c.b16 %v815, %v814
      %v828 = vpack.c.b16 %v817, %v816
      %v829 = vpack.c.b16 %v819, %v818
      %v830 = vpack.c.b16 %v821, %v820
      %v831 = vpack.c.b16 %v823, %v822
      %840 = vmatprep.subr.bf16.mxu0 0
      %841 = vmatpush1.bf16.msra.mxu0 %v824
      %842 = vmatprep.subr.bf16.mxu0 0
      %843 = vmatpush1.bf16.msra.mxu0 %v825
      %844 = vmatprep.subr.bf16.mxu0 0
      %845 = vmatpush1.bf16.msra.mxu0 %v826
      %846 = vmatprep.subr.bf16.mxu0 0
      %847 = vmatpush1.bf16.msra.mxu0 %v827
      %848 = vmatprep.subr.bf16.mxu0 0
      %849 = vmatpush1.bf16.msra.mxu0 %v828
      %850 = vmatprep.subr.bf16.mxu0 0
      %851 = vmatpush1.bf16.msra.mxu0 %v829
      %852 = vmatprep.subr.bf16.mxu0 0
      %853 = vmatpush1.bf16.msra.mxu0 %v830
      %854 = vmatprep.subr.bf16.mxu0 0
      %855 = vmatpush1.bf16.msra.mxu0 %v831
      %856 = vmatprep.subr.bf16.mxu0 0
      %857 = vmatpush1.bf16.msra.mxu0 0
      %858 = vmatprep.subr.bf16.mxu0 0
      %859 = vmatpush1.bf16.msra.mxu0 0
      %860 = vmatprep.subr.bf16.mxu0 0
      %861 = vmatpush1.bf16.msra.mxu0 0
      %862 = vmatprep.subr.bf16.mxu0 0
      %863 = vmatpush1.bf16.msra.mxu0 0
      %864 = vmatprep.subr.bf16.mxu0 0
      %865 = vmatpush1.bf16.msra.mxu0 0
      %866 = vmatprep.subr.bf16.mxu0 0
      %867 = vmatpush1.bf16.msra.mxu0 0
      %868 = vmatprep.subr.bf16.mxu0 0
      %869 = vmatpush1.bf16.msra.mxu0 0
      %870 = vmatprep.subr.bf16.mxu0 0
      %871 = vmatpush1.bf16.msra.mxu0 0
      %872 = vmatprep.mubr.bf16.mxu0 0
      %873 = vmatmul.mubr.bf16.gmra.mrb[0].mxu0 %v774
      %v874 = vpop.f32.mrb[0].mxu0
      %v875 = vadd.f32 0.0, %v874
      %v876 = vpop.f32.mrb[0].mxu0
      %v877 = vpop.f32.mrb[0].mxu0
      %v878 = vadd.f32 0.0, %v877
      %v879 = vpop.f32.mrb[0].mxu0
      %880 = vdwg.mxu0
      %v881 = vadd.f32 %v766, %v875
      %v882 = vadd.f32 %v769, %v878
      %v883 = vld [vmem:[%s5] sm:$0x1]
      %v885 = vlaneseq
      %v886 = vshrl.u32 %v885, 7
      %v887 = vsub.s32 0, %v886
      %v888 = vrot.slane %v883, %v887
      %v890 = vmul.f32 %v881, %v888
      %v891 = vmul.f32 %v882, %v888
      %v892 = vld [vmem:[%s6] sm:$0x1]
      %v894 = vlaneseq
      %v895 = vshrl.u32 %v894, 7
      %v896 = vsub.s32 0, %v895
      %v897 = vrot.slane %v892, %v896
      %v899 = vadd.f32 %v890, %v897
      %v900 = vadd.f32 %v891, %v897
      %v901 = vmax.f32 %v899, 0.0
      %v902 = vmax.f32 %v900, 0.0
      %903 = vst [vmem:[%s278] sm:$0xff] %v901
      %904 = vst [vmem:[%s278 + $0x8] sm:$0xff] %v902
      %p905 = scmp.lt.s32.totalorder %s18, 1
      %s906 = scalar_select %p905, %s18, 1
      %s907 = smul.addr %s906, 2
      %s908 = smul.addr %s907, 8
      %s909 = scalar_lea.vmem %s7, %s908
      // Predicated region
      $region49: #{conv_block_pallas.1} parent=47 // pred_check
        %p910 = pneg %p188
      $region50: #{conv_block_pallas.1} parent=47 // pred_check_branch
        %912 = sbr.rel (%p910) target = $region52
      $region51: #{conv_block_pallas.1} parent=47 // pred_region
        _
      $region52: #{conv_block_pallas.1} parent=47 // pred_fallthru
        _
    $region48: #{conv_block_pallas.1} parent=5 // pred_fallthru
      _
    %p913 = scmp.le.s32.totalorder 2, %s13
    // Predicated region
    $region53: #{conv_block_pallas.1} parent=5 // pred_check
      %p914 = pneg %p913
    $region54: #{conv_block_pallas.1} parent=5 // pred_check_branch
      %916 = sbr.rel (%p914) target = $region56
    $region55: #{conv_block_pallas.1} parent=5 // pred_region
      %s917 = ssub.s32 %s13, 2
      // Predicated region
      $region57: #{conv_block_pallas.1} parent=55 // pred_check
        %p918 = pneg %p194
      $region58: #{conv_block_pallas.1} parent=55 // pred_check_branch
        %920 = sbr.rel (%p918) target = $region60
      $region59: #{conv_block_pallas.1} parent=55 // pred_region
        %p921 = scmp.lt.s32.totalorder %s19, 1
        %s922 = scalar_select %p921, %s19, 1
        %s923 = smul.addr %s922, 2
        %s924 = smul.addr %s923, 8
        %s925 = scalar_lea.vmem %s7, %s924
      $region60: #{conv_block_pallas.1} parent=55 // pred_fallthru
        _
    $region56: #{conv_block_pallas.1} parent=5 // pred_fallthru
      _
  $region6: #{conv_block_pallas.1} parent=0 // loop_footer
    %s17 = sadd.s32 1, %s13
  $region7: #{conv_block_pallas.1} parent=0 // loop_footer_branch
    %12 = sbr.rel target = $region3
  $region8: #{conv_block_pallas.1} parent=0 // loop_exit
    _

</llo_original>
